<compile_context>
chip_gen: v7x
topology: tpu7x:2x2x1
jax: 0.10.0
libtpu: 0.0.40
codegen_flags: <defaults>
</compile_context>

<pallas_src>
import functools

import jax
import jax.numpy as jnp
from jax import lax
from jax.experimental import pallas as pl
from jax.experimental.pallas import tpu as pltpu


def generator_kernel(tokens_ref, emb_ref, wg_ref, wlm_ref, out_ref, *,
                     context_len, max_len, vocab_size):
    """Greedy decode fully in VMEM.

    tokens_ref : (Bp, context_len)           int32     prompt tokens (batch padded to 8)
    emb_ref    : (vocab_size, n_embd)        bfloat16  token embedding table
    wg_ref     : (n_embd, n_embd)            bfloat16  synthetic-GPT MLP weight
    wlm_ref    : (n_embd, vocab_size)        bfloat16  lm_head weight (pre-transposed)
    out_ref    : (Bp, context_len + max_len) int32     prompt + generated tokens
    """
    B = tokens_ref.shape[0]

    tokens = tokens_ref[...]                                     # (B, ctx) int32
    cur = tokens[:, context_len - 1:context_len]                 # (B, 1) last prompt token

    # ---- Hoisted, token-independent precompute (runs once, off the serial chain) ----
    # hidden(t) = tanh(E[t] @ Wg) for every vocab entry t          (backbone stub)
    hidden = jnp.tanh(jnp.dot(emb_ref[...], wg_ref[...],
                              preferred_element_type=jnp.float32))     # (V, n_embd) f32
    hidden = hidden.astype(jnp.bfloat16)                         # backbone emits bf16 acts
    # lm_head over the whole vocab: table[t, j] = logits of token j given token t
    table = jnp.dot(hidden, wlm_ref[...],
                    preferred_element_type=jnp.float32)          # (V, V) f32
    # First-argmax of every row -> next_of[t] = greedy (topk k=1) next token after t.
    row_ids = lax.broadcasted_iota(jnp.int32, (vocab_size, vocab_size), 1)
    row_max = jnp.max(table, axis=1, keepdims=True)              # (V, 1)
    next_of = jnp.min(jnp.where(table == row_max, row_ids, vocab_size),
                      axis=1, keepdims=True)                     # (V, 1) int32, first max
    # Replicate across lanes as exact small-integer floats so each decode step is a
    # single tiny one-hot matmul that is exact in any MXU precision mode.
    next_of_f = jnp.broadcast_to(next_of.astype(jnp.float32),
                                 (vocab_size, vocab_size))       # (V, V) f32

    # ---- Serial decode loop: static unroll, cheap exact selection per step ----
    lane_ids = lax.broadcasted_iota(jnp.int32, (B, vocab_size), 1)   # (B, V)
    step_ids = lax.broadcasted_iota(jnp.int32, (B, max_len), 1)      # (B, max_len)
    gen = jnp.zeros((B, max_len), jnp.int32)

    for s in range(max_len):                                     # max_len static & small
        onehot = (lane_ids == cur).astype(jnp.float32)           # (B, V)
        sel = jnp.dot(onehot, next_of_f,
                      preferred_element_type=jnp.float32)        # (B, V), value in every lane
        cur = sel[:, 0:1].astype(jnp.int32)                      # (B, 1) next token (exact)
        gen = jnp.where(step_ids == s, cur, gen)                 # accumulate in vregs

    # ---- Two bulk stores instead of 8 masked dynamic-lane stores ----
    out_ref[:, :context_len] = tokens
    out_ref[:, context_len:context_len + max_len] = gen


def generate(tokens, emb, wg, wlm_t, *, max_len):
    B, ctx = tokens.shape
    vocab = emb.shape[0]
    total = ctx + max_len
    # Pad batch to the int32/f32 sublane count (8) so vregs / MXU rows are filled.
    B_pad = max(8, -(-B // 8) * 8)
    tokens_p = jnp.pad(tokens, ((0, B_pad - B), (0, 0)))         # pad rows use token id 0
    kernel = functools.partial(generator_kernel, context_len=ctx,
                               max_len=max_len, vocab_size=vocab)
    out = pl.pallas_call(
        kernel,
        out_shape=jax.ShapeDtypeStruct((B_pad, total), jnp.int32),
        in_specs=[pl.BlockSpec(memory_space=pltpu.MemorySpace.VMEM)] * 4,
        out_specs=pl.BlockSpec(memory_space=pltpu.MemorySpace.VMEM),
    )(tokens_p, emb, wg, wlm_t)
    return out[:B]


def ref_generate(tokens, E, Wg, Wlm_t, *, max_len):
    """Pure-JAX reference mirroring the PyTorch per-step forward (stub backbone)."""
    gen = tokens
    cur = tokens[:, -1]
    for _ in range(max_len):
        emb = E[cur]                                              # (B, n_embd) bf16
        hidden = jnp.tanh(jnp.dot(emb, Wg, preferred_element_type=jnp.float32))
        hidden = hidden.astype(jnp.bfloat16)                      # backbone emits bf16
        logits = jnp.dot(hidden, Wlm_t, preferred_element_type=jnp.float32)
        nxt = jnp.argmax(logits, axis=1).astype(jnp.int32)        # topk(k=1) greedy pick
        gen = jnp.concatenate([gen, nxt[:, None]], axis=1)
        cur = nxt
    return gen


if __name__ == "__main__":
    # small config consistent with the module:
    #   config.n_embd = 32, config.vocab_size = 128, max_len = 8
    B, context_len = 2, 4
    n_embd, vocab_size, max_len = 32, 128, 8

    key = jax.random.PRNGKey(0)
    k_tok, k_emb, k_wg, k_lm = jax.random.split(key, 4)

    tokens = jax.random.randint(k_tok, (B, context_len), 0, vocab_size, dtype=jnp.int32)
    # bf16 weights / embedding table (perf review): matmuls run bf16 x bf16 -> f32.
    emb_table = (jax.random.normal(k_emb, (vocab_size, n_embd), jnp.float32) * 0.1
                 ).astype(jnp.bfloat16)
    wg = (jax.random.normal(k_wg, (n_embd, n_embd), jnp.float32) * 0.1
          ).astype(jnp.bfloat16)
    # nn.Linear(n_embd, vocab_size, bias=False).weight has shape (vocab_size, n_embd);
    # we store its transpose so the kernel computes hidden @ W^T directly.
    lm_head_w = (jax.random.normal(k_lm, (vocab_size, n_embd), jnp.float32) * 0.1
                 ).astype(jnp.bfloat16)
    wlm_t = lm_head_w.T                                           # (n_embd, vocab_size)

    out = generate(tokens, emb_table, wg, wlm_t, max_len=max_len)
    out = jax.block_until_ready(out)

    ref = ref_generate(tokens, emb_table, wg, wlm_t, max_len=max_len)
    assert out.shape == (B, context_len + max_len)
    assert jnp.array_equal(out, ref), (out, ref)

    print("KERNEL_OK")
</pallas_src>

<mosaic_0001>
module attributes {stable_mosaic.version = 11 : i64} {
  func.func @generator_kernel(%arg0: memref<8x4xi32, #tpu.memory_space<vmem>>, %arg1: memref<128x32xbf16, #tpu.memory_space<vmem>>, %arg2: memref<32x32xbf16, #tpu.memory_space<vmem>>, %arg3: memref<32x128xbf16, #tpu.memory_space<vmem>>, %arg4: memref<8x12xi32, #tpu.memory_space<vmem>>) attributes {dimension_semantics = [], scalar_prefetch = 0 : i64, scratch_operands = 0 : i64, tpu.core_type = #tpu.core_type<tc>} {
    %c0 = arith.constant 0 : index
    %c0_0 = arith.constant 0 : index
    %0 = vector.load %arg0[%c0, %c0_0] : memref<8x4xi32, #tpu.memory_space<vmem>>, vector<8x4xi32>
    %1 = vector.extract_strided_slice %0 {offsets = [0, 3], sizes = [8, 1], strides = [1, 1]} : vector<8x4xi32> to vector<8x1xi32>
    %c0_1 = arith.constant 0 : index
    %c0_2 = arith.constant 0 : index
    %2 = vector.load %arg1[%c0_1, %c0_2] : memref<128x32xbf16, #tpu.memory_space<vmem>>, vector<128x32xbf16>
    %c0_3 = arith.constant 0 : index
    %c0_4 = arith.constant 0 : index
    %3 = vector.load %arg2[%c0_3, %c0_4] : memref<32x32xbf16, #tpu.memory_space<vmem>>, vector<32x32xbf16>
    %cst = arith.constant dense<0.000000e+00> : vector<128x32xf32>
    %4 = tpu.matmul %2, %3, %cst {dimension_numbers = #tpu.dot_dimension_numbers<[1], [0], [0], [1], [0, 0, 1, 1], [], []>} : vector<128x32xbf16>, vector<32x32xbf16>, vector<128x32xf32> -> vector<128x32xf32>
    %5 = math.tanh %4 : vector<128x32xf32>
    %6 = arith.truncf %5 : vector<128x32xf32> to vector<128x32xbf16>
    %c0_5 = arith.constant 0 : index
    %c0_6 = arith.constant 0 : index
    %7 = vector.load %arg3[%c0_5, %c0_6] : memref<32x128xbf16, #tpu.memory_space<vmem>>, vector<32x128xbf16>
    %cst_7 = arith.constant dense<0.000000e+00> : vector<128x128xf32>
    %8 = tpu.matmul %6, %7, %cst_7 {dimension_numbers = #tpu.dot_dimension_numbers<[1], [0], [0], [1], [0, 0, 1, 1], [], []>} : vector<128x32xbf16>, vector<32x128xbf16>, vector<128x128xf32> -> vector<128x128xf32>
    %9 = tpu.iota {dimensions = array<i32: 1>} : vector<128x128xi32>
    %cst_8 = arith.constant dense<0xFF800000> : vector<128xf32>
    %10 = vector.multi_reduction <maximumf>, %8, %cst_8 [1] : vector<128x128xf32> to vector<128xf32>
    %11 = vector.shape_cast %10 : vector<128xf32> to vector<128x1xf32>
    %12 = vector.broadcast %11 : vector<128x1xf32> to vector<128x128xf32>
    %13 = arith.cmpf oeq, %8, %12 : vector<128x128xf32>
    %c128_i32 = arith.constant 128 : i32
    %14 = vector.broadcast %c128_i32 : i32 to vector<128x128xi32>
    %15 = arith.select %13, %9, %14 : vector<128x128xi1>, vector<128x128xi32>
    %cst_9 = arith.constant dense<2147483647> : vector<128xi32>
    %16 = vector.multi_reduction <minsi>, %15, %cst_9 [1] : vector<128x128xi32> to vector<128xi32>
    %17 = vector.shape_cast %16 : vector<128xi32> to vector<128x1xi32>
    %18 = arith.sitofp %17 : vector<128x1xi32> to vector<128x1xf32>
    %19 = vector.shape_cast %18 : vector<128x1xf32> to vector<128x1xf32>
    %20 = vector.broadcast %19 : vector<128x1xf32> to vector<128x128xf32>
    %21 = tpu.iota {dimensions = array<i32: 1>} : vector<8x128xi32>
    %22 = tpu.iota {dimensions = array<i32: 1>} : vector<8x8xi32>
    %c0_i32 = arith.constant 0 : i32
    %23 = vector.broadcast %c0_i32 : i32 to vector<8x8xi32>
    %24 = vector.broadcast %1 : vector<8x1xi32> to vector<8x128xi32>
    %25 = arith.cmpi eq, %21, %24 : vector<8x128xi32>
    %26 = arith.extui %25 : vector<8x128xi1> to vector<8x128xi32>
    %27 = arith.sitofp %26 : vector<8x128xi32> to vector<8x128xf32>
    %cst_10 = arith.constant dense<0.000000e+00> : vector<8x128xf32>
    %28 = tpu.matmul %27, %20, %cst_10 {dimension_numbers = #tpu.dot_dimension_numbers<[1], [0], [0], [1], [0, 0, 1, 1], [], []>} : vector<8x128xf32>, vector<128x128xf32>, vector<8x128xf32> -> vector<8x128xf32>
    %29 = vector.extract_strided_slice %28 {offsets = [0, 0], sizes = [8, 1], strides = [1, 1]} : vector<8x128xf32> to vector<8x1xf32>
    %30 = arith.fptosi %29 : vector<8x1xf32> to vector<8x1xi32>
    %c0_i32_11 = arith.constant 0 : i32
    %31 = vector.broadcast %c0_i32_11 : i32 to vector<8x8xi32>
    %32 = arith.cmpi eq, %22, %31 : vector<8x8xi32>
    %33 = vector.shape_cast %30 : vector<8x1xi32> to vector<8x1xi32>
    %34 = vector.broadcast %33 : vector<8x1xi32> to vector<8x8xi32>
    %35 = arith.select %32, %34, %23 : vector<8x8xi1>, vector<8x8xi32>
    %36 = vector.broadcast %30 : vector<8x1xi32> to vector<8x128xi32>
    %37 = arith.cmpi eq, %21, %36 : vector<8x128xi32>
    %38 = arith.extui %37 : vector<8x128xi1> to vector<8x128xi32>
    %39 = arith.sitofp %38 : vector<8x128xi32> to vector<8x128xf32>
    %cst_12 = arith.constant dense<0.000000e+00> : vector<8x128xf32>
    %40 = tpu.matmul %39, %20, %cst_12 {dimension_numbers = #tpu.dot_dimension_numbers<[1], [0], [0], [1], [0, 0, 1, 1], [], []>} : vector<8x128xf32>, vector<128x128xf32>, vector<8x128xf32> -> vector<8x128xf32>
    %41 = vector.extract_strided_slice %40 {offsets = [0, 0], sizes = [8, 1], strides = [1, 1]} : vector<8x128xf32> to vector<8x1xf32>
    %42 = arith.fptosi %41 : vector<8x1xf32> to vector<8x1xi32>
    %c1_i32 = arith.constant 1 : i32
    %43 = vector.broadcast %c1_i32 : i32 to vector<8x8xi32>
    %44 = arith.cmpi eq, %22, %43 : vector<8x8xi32>
    %45 = vector.shape_cast %42 : vector<8x1xi32> to vector<8x1xi32>
    %46 = vector.broadcast %45 : vector<8x1xi32> to vector<8x8xi32>
    %47 = arith.select %44, %46, %35 : vector<8x8xi1>, vector<8x8xi32>
    %48 = vector.broadcast %42 : vector<8x1xi32> to vector<8x128xi32>
    %49 = arith.cmpi eq, %21, %48 : vector<8x128xi32>
    %50 = arith.extui %49 : vector<8x128xi1> to vector<8x128xi32>
    %51 = arith.sitofp %50 : vector<8x128xi32> to vector<8x128xf32>
    %cst_13 = arith.constant dense<0.000000e+00> : vector<8x128xf32>
    %52 = tpu.matmul %51, %20, %cst_13 {dimension_numbers = #tpu.dot_dimension_numbers<[1], [0], [0], [1], [0, 0, 1, 1], [], []>} : vector<8x128xf32>, vector<128x128xf32>, vector<8x128xf32> -> vector<8x128xf32>
    %53 = vector.extract_strided_slice %52 {offsets = [0, 0], sizes = [8, 1], strides = [1, 1]} : vector<8x128xf32> to vector<8x1xf32>
    %54 = arith.fptosi %53 : vector<8x1xf32> to vector<8x1xi32>
    %c2_i32 = arith.constant 2 : i32
    %55 = vector.broadcast %c2_i32 : i32 to vector<8x8xi32>
    %56 = arith.cmpi eq, %22, %55 : vector<8x8xi32>
    %57 = vector.shape_cast %54 : vector<8x1xi32> to vector<8x1xi32>
    %58 = vector.broadcast %57 : vector<8x1xi32> to vector<8x8xi32>
    %59 = arith.select %56, %58, %47 : vector<8x8xi1>, vector<8x8xi32>
    %60 = vector.broadcast %54 : vector<8x1xi32> to vector<8x128xi32>
    %61 = arith.cmpi eq, %21, %60 : vector<8x128xi32>
    %62 = arith.extui %61 : vector<8x128xi1> to vector<8x128xi32>
    %63 = arith.sitofp %62 : vector<8x128xi32> to vector<8x128xf32>
    %cst_14 = arith.constant dense<0.000000e+00> : vector<8x128xf32>
    %64 = tpu.matmul %63, %20, %cst_14 {dimension_numbers = #tpu.dot_dimension_numbers<[1], [0], [0], [1], [0, 0, 1, 1], [], []>} : vector<8x128xf32>, vector<128x128xf32>, vector<8x128xf32> -> vector<8x128xf32>
    %65 = vector.extract_strided_slice %64 {offsets = [0, 0], sizes = [8, 1], strides = [1, 1]} : vector<8x128xf32> to vector<8x1xf32>
    %66 = arith.fptosi %65 : vector<8x1xf32> to vector<8x1xi32>
    %c3_i32 = arith.constant 3 : i32
    %67 = vector.broadcast %c3_i32 : i32 to vector<8x8xi32>
    %68 = arith.cmpi eq, %22, %67 : vector<8x8xi32>
    %69 = vector.shape_cast %66 : vector<8x1xi32> to vector<8x1xi32>
    %70 = vector.broadcast %69 : vector<8x1xi32> to vector<8x8xi32>
    %71 = arith.select %68, %70, %59 : vector<8x8xi1>, vector<8x8xi32>
    %72 = vector.broadcast %66 : vector<8x1xi32> to vector<8x128xi32>
    %73 = arith.cmpi eq, %21, %72 : vector<8x128xi32>
    %74 = arith.extui %73 : vector<8x128xi1> to vector<8x128xi32>
    %75 = arith.sitofp %74 : vector<8x128xi32> to vector<8x128xf32>
    %cst_15 = arith.constant dense<0.000000e+00> : vector<8x128xf32>
    %76 = tpu.matmul %75, %20, %cst_15 {dimension_numbers = #tpu.dot_dimension_numbers<[1], [0], [0], [1], [0, 0, 1, 1], [], []>} : vector<8x128xf32>, vector<128x128xf32>, vector<8x128xf32> -> vector<8x128xf32>
    %77 = vector.extract_strided_slice %76 {offsets = [0, 0], sizes = [8, 1], strides = [1, 1]} : vector<8x128xf32> to vector<8x1xf32>
    %78 = arith.fptosi %77 : vector<8x1xf32> to vector<8x1xi32>
    %c4_i32 = arith.constant 4 : i32
    %79 = vector.broadcast %c4_i32 : i32 to vector<8x8xi32>
    %80 = arith.cmpi eq, %22, %79 : vector<8x8xi32>
    %81 = vector.shape_cast %78 : vector<8x1xi32> to vector<8x1xi32>
    %82 = vector.broadcast %81 : vector<8x1xi32> to vector<8x8xi32>
    %83 = arith.select %80, %82, %71 : vector<8x8xi1>, vector<8x8xi32>
    %84 = vector.broadcast %78 : vector<8x1xi32> to vector<8x128xi32>
    %85 = arith.cmpi eq, %21, %84 : vector<8x128xi32>
    %86 = arith.extui %85 : vector<8x128xi1> to vector<8x128xi32>
    %87 = arith.sitofp %86 : vector<8x128xi32> to vector<8x128xf32>
    %cst_16 = arith.constant dense<0.000000e+00> : vector<8x128xf32>
    %88 = tpu.matmul %87, %20, %cst_16 {dimension_numbers = #tpu.dot_dimension_numbers<[1], [0], [0], [1], [0, 0, 1, 1], [], []>} : vector<8x128xf32>, vector<128x128xf32>, vector<8x128xf32> -> vector<8x128xf32>
    %89 = vector.extract_strided_slice %88 {offsets = [0, 0], sizes = [8, 1], strides = [1, 1]} : vector<8x128xf32> to vector<8x1xf32>
    %90 = arith.fptosi %89 : vector<8x1xf32> to vector<8x1xi32>
    %c5_i32 = arith.constant 5 : i32
    %91 = vector.broadcast %c5_i32 : i32 to vector<8x8xi32>
    %92 = arith.cmpi eq, %22, %91 : vector<8x8xi32>
    %93 = vector.shape_cast %90 : vector<8x1xi32> to vector<8x1xi32>
    %94 = vector.broadcast %93 : vector<8x1xi32> to vector<8x8xi32>
    %95 = arith.select %92, %94, %83 : vector<8x8xi1>, vector<8x8xi32>
    %96 = vector.broadcast %90 : vector<8x1xi32> to vector<8x128xi32>
    %97 = arith.cmpi eq, %21, %96 : vector<8x128xi32>
    %98 = arith.extui %97 : vector<8x128xi1> to vector<8x128xi32>
    %99 = arith.sitofp %98 : vector<8x128xi32> to vector<8x128xf32>
    %cst_17 = arith.constant dense<0.000000e+00> : vector<8x128xf32>
    %100 = tpu.matmul %99, %20, %cst_17 {dimension_numbers = #tpu.dot_dimension_numbers<[1], [0], [0], [1], [0, 0, 1, 1], [], []>} : vector<8x128xf32>, vector<128x128xf32>, vector<8x128xf32> -> vector<8x128xf32>
    %101 = vector.extract_strided_slice %100 {offsets = [0, 0], sizes = [8, 1], strides = [1, 1]} : vector<8x128xf32> to vector<8x1xf32>
    %102 = arith.fptosi %101 : vector<8x1xf32> to vector<8x1xi32>
    %c6_i32 = arith.constant 6 : i32
    %103 = vector.broadcast %c6_i32 : i32 to vector<8x8xi32>
    %104 = arith.cmpi eq, %22, %103 : vector<8x8xi32>
    %105 = vector.shape_cast %102 : vector<8x1xi32> to vector<8x1xi32>
    %106 = vector.broadcast %105 : vector<8x1xi32> to vector<8x8xi32>
    %107 = arith.select %104, %106, %95 : vector<8x8xi1>, vector<8x8xi32>
    %108 = vector.broadcast %102 : vector<8x1xi32> to vector<8x128xi32>
    %109 = arith.cmpi eq, %21, %108 : vector<8x128xi32>
    %110 = arith.extui %109 : vector<8x128xi1> to vector<8x128xi32>
    %111 = arith.sitofp %110 : vector<8x128xi32> to vector<8x128xf32>
    %cst_18 = arith.constant dense<0.000000e+00> : vector<8x128xf32>
    %112 = tpu.matmul %111, %20, %cst_18 {dimension_numbers = #tpu.dot_dimension_numbers<[1], [0], [0], [1], [0, 0, 1, 1], [], []>} : vector<8x128xf32>, vector<128x128xf32>, vector<8x128xf32> -> vector<8x128xf32>
    %113 = vector.extract_strided_slice %112 {offsets = [0, 0], sizes = [8, 1], strides = [1, 1]} : vector<8x128xf32> to vector<8x1xf32>
    %114 = arith.fptosi %113 : vector<8x1xf32> to vector<8x1xi32>
    %c7_i32 = arith.constant 7 : i32
    %115 = vector.broadcast %c7_i32 : i32 to vector<8x8xi32>
    %116 = arith.cmpi eq, %22, %115 : vector<8x8xi32>
    %117 = vector.shape_cast %114 : vector<8x1xi32> to vector<8x1xi32>
    %118 = vector.broadcast %117 : vector<8x1xi32> to vector<8x8xi32>
    %119 = arith.select %116, %118, %107 : vector<8x8xi1>, vector<8x8xi32>
    %c0_19 = arith.constant 0 : index
    %c0_20 = arith.constant 0 : index
    %120 = vector.load %arg4[%c0_19, %c0_20] : memref<8x12xi32, #tpu.memory_space<vmem>>, vector<8x4xi32>
    tpu.vector_store %arg4[%c0_19, %c0_20], %0 {strides = array<i32>} : memref<8x12xi32, #tpu.memory_space<vmem>>, vector<8x4xi32>,
    %c0_21 = arith.constant 0 : index
    %c4 = arith.constant 4 : index
    %121 = vector.load %arg4[%c0_21, %c4] : memref<8x12xi32, #tpu.memory_space<vmem>>, vector<8x8xi32>
    tpu.vector_store %arg4[%c0_21, %c4], %119 {strides = array<i32>} : memref<8x12xi32, #tpu.memory_space<vmem>>, vector<8x8xi32>,
    return
  }
}

</mosaic_0001>

<llo_original>
// kernel: tpu_custom_call.1
$region0: #{tpu_custom_call.1}
  #allocation0 [shape = 'u32[]', space=smem, size = 0x4, offset = 0x4, fixed_abs, tag = 'smem constant byte address 0x4 - core index']
  #allocation1 [shape = 'u32[144,128]{1,0:T(1,128)}', space=vmem, size = 0x12000, scoped, tag = 'internal scratch']
  %s0 = inlined_call_operand.vmem [shape: s32[8,4], index: 0, kind: input, shape index: {}]
  %s1 = inlined_call_operand.vmem [shape: bf16[128,32], index: 1, kind: input, shape index: {}]
  %s2 = inlined_call_operand.vmem [shape: bf16[32,32], index: 2, kind: input, shape index: {}]
  %s3 = inlined_call_operand.vmem [shape: bf16[32,128], index: 3, kind: input, shape index: {}]
  %s4 = inlined_call_operand.hbm [shape: s32[8,12], index: 4, kind: output, shape index: {}]
  %s5 = sld [smem:[#allocation0]]
  $region26: #{tpu_custom_call.1} parent=0
    _
  %s7 = ssub.s32 1, %s5
  %s8 = scalar_select 0, %s7, %s5
  $region1: #{tpu_custom_call.1} parent=0
    #allocation2 [shape = 'u8[4096]{0}', space=vmem, size = 0x1000, scoped, tag = 'output window, operand 0, single buffered']
    #allocation3 [shape = 's32[1]{0}', space=sflag, size = 0x4, scoped, tag = 'scoped memory for tpu_custom_call.1']
    %9 = vsyncpa [#allocation3], 0
    // Predicated region
    $region2: #{tpu_custom_call.1} parent=1 // pred_check
      _
    $region3: #{tpu_custom_call.1} parent=1 // pred_check_branch
      %11 = sbr.rel (0) target = $region5
    $region4: #{tpu_custom_call.1} parent=1 // pred_region
      _
    $region5: #{tpu_custom_call.1} parent=1 // pred_fallthru
      _
    // Predicated region
    $region6: #{tpu_custom_call.1} parent=1 // pred_check
      _
    $region7: #{tpu_custom_call.1} parent=1 // pred_check_branch
      %13 = sbr.rel (0) target = $region9
    $region8: #{tpu_custom_call.1} parent=1 // pred_region
      _
    $region9: #{tpu_custom_call.1} parent=1 // pred_fallthru
      _
    // Predicated region
    $region10: #{tpu_custom_call.1} parent=1 // pred_check
      _
    $region11: #{tpu_custom_call.1} parent=1 // pred_check_branch
      %15 = sbr.rel (0) target = $region13
    $region12: #{tpu_custom_call.1} parent=1 // pred_region
      _
    $region13: #{tpu_custom_call.1} parent=1 // pred_fallthru
      _
    // Predicated region
    $region14: #{tpu_custom_call.1} parent=1 // pred_check
      _
    $region15: #{tpu_custom_call.1} parent=1 // pred_check_branch
      %17 = sbr.rel (0) target = $region17
    $region16: #{tpu_custom_call.1} parent=1 // pred_region
      _
    $region17: #{tpu_custom_call.1} parent=1 // pred_fallthru
      _
    %v19 = vld [vmem:[%s0] sm:$0xff]
    %v20 = vld [vmem:[%s1] sm:$0xf]
    %v21 = vld [vmem:[%s1 + $0x4] sm:$0xf]
    %v22 = vld [vmem:[%s1 + $0x8] sm:$0xf]
    %v23 = vld [vmem:[%s1 + $0xc] sm:$0xf]
    %v24 = vld [vmem:[%s1 + $0x10] sm:$0xf]
    %v25 = vld [vmem:[%s1 + $0x14] sm:$0xf]
    %v26 = vld [vmem:[%s1 + $0x18] sm:$0xf]
    %v27 = vld [vmem:[%s1 + $0x1c] sm:$0xf]
    %v28 = vld [vmem:[%s1 + $0x20] sm:$0xf]
    %v29 = vld [vmem:[%s1 + $0x24] sm:$0xf]
    %v30 = vld [vmem:[%s1 + $0x28] sm:$0xf]
    %v31 = vld [vmem:[%s1 + $0x2c] sm:$0xf]
    %v32 = vld [vmem:[%s1 + $0x30] sm:$0xf]
    %v33 = vld [vmem:[%s1 + $0x34] sm:$0xf]
    %v34 = vld [vmem:[%s1 + $0x38] sm:$0xf]
    %v35 = vld [vmem:[%s1 + $0x3c] sm:$0xf]
    %v36 = vld [vmem:[%s2] sm:$0xf]
    %v37 = vld [vmem:[%s2 + $0x4] sm:$0xf]
    %v38 = vld [vmem:[%s2 + $0x8] sm:$0xf]
    %v39 = vld [vmem:[%s2 + $0xc] sm:$0xf]
    %v56 = vunpack.c.l.b16 %v20
    %v57 = vunpack.c.l.b16 %v21
    %v58 = vunpack.c.l.b16 %v22
    %v59 = vunpack.c.l.b16 %v23
    %v60 = vunpack.c.l.b16 %v24
    %v61 = vunpack.c.l.b16 %v25
    %v62 = vunpack.c.l.b16 %v26
    %v63 = vunpack.c.l.b16 %v27
    %v64 = vunpack.c.l.b16 %v28
    %v65 = vunpack.c.l.b16 %v29
    %v66 = vunpack.c.l.b16 %v30
    %v67 = vunpack.c.l.b16 %v31
    %v68 = vunpack.c.l.b16 %v32
    %v69 = vunpack.c.l.b16 %v33
    %v70 = vunpack.c.l.b16 %v34
    %v71 = vunpack.c.l.b16 %v35
    %v72 = vpack.c.b16 %v57, %v56
    %v73 = vpack.c.b16 %v59, %v58
    %v74 = vpack.c.b16 %v61, %v60
    %v75 = vpack.c.b16 %v63, %v62
    %v76 = vpack.c.b16 %v65, %v64
    %v77 = vpack.c.b16 %v67, %v66
    %v78 = vpack.c.b16 %v69, %v68
    %v79 = vpack.c.b16 %v71, %v70
    %v84 = vunpack.c.l.b16 %v36
    %v85 = vunpack.c.l.b16 %v37
    %v86 = vunpack.c.l.b16 %v38
    %v87 = vunpack.c.l.b16 %v39
    %v88 = vpack.c.b16 %v85, %v84
    %v89 = vpack.c.b16 %v87, %v86
    %vm92 = vcmask 261120
    %v94 = vsel %vm92, %v72, 0
    %v97 = vsel %vm92, %v73, 0
    %v100 = vsel %vm92, %v74, 0
    %v103 = vsel %vm92, %v75, 0
    %v106 = vsel %vm92, %v76, 0
    %v109 = vsel %vm92, %v77, 0
    %v112 = vsel %vm92, %v78, 0
    %v115 = vsel %vm92, %v79, 0
    %117 = vmatprep.subr.bf16.mxu0 0
    %118 = vmatpush1.bf16.msra.mxu0 %v88
    %119 = vmatprep.subr.bf16.mxu0 0
    %120 = vmatpush1.bf16.msra.mxu0 %v89
    %121 = vmatprep.subr.bf16.mxu0 0
    %122 = vmatpush1.bf16.msra.mxu0 0
    %123 = vmatprep.subr.bf16.mxu0 0
    %124 = vmatpush1.bf16.msra.mxu0 0
    %125 = vmatprep.subr.bf16.mxu0 0
    %126 = vmatpush1.bf16.msra.mxu0 0
    %127 = vmatprep.subr.bf16.mxu0 0
    %128 = vmatpush1.bf16.msra.mxu0 0
    %129 = vmatprep.subr.bf16.mxu0 0
    %130 = vmatpush1.bf16.msra.mxu0 0
    %131 = vmatprep.subr.bf16.mxu0 0
    %132 = vmatpush1.bf16.msra.mxu0 0
    %133 = vmatprep.subr.bf16.mxu0 0
    %134 = vmatpush1.bf16.msra.mxu0 0
    %135 = vmatprep.subr.bf16.mxu0 0
    %136 = vmatpush1.bf16.msra.mxu0 0
    %137 = vmatprep.subr.bf16.mxu0 0
    %138 = vmatpush1.bf16.msra.mxu0 0
    %139 = vmatprep.subr.bf16.mxu0 0
    %140 = vmatpush1.bf16.msra.mxu0 0
    %141 = vmatprep.subr.bf16.mxu0 0
    %142 = vmatpush1.bf16.msra.mxu0 0
    %143 = vmatprep.subr.bf16.mxu0 0
    %144 = vmatpush1.bf16.msra.mxu0 0
    %145 = vmatprep.subr.bf16.mxu0 0
    %146 = vmatpush1.bf16.msra.mxu0 0
    %147 = vmatprep.subr.bf16.mxu0 0
    %148 = vmatpush1.bf16.msra.mxu0 0
    %149 = vmatprep.mubr.bf16.mxu0 0
    %150 = vmatmul.mubr.bf16.gmra.mrb[0].mxu0 %v94
    %v151 = vpop.f32.mrb[0].mxu0
    %v152 = vadd.f32 0.0, %v151
    %v153 = vpop.f32.mrb[0].mxu0
    %v154 = vpop.f32.mrb[0].mxu0
    %v155 = vadd.f32 0.0, %v154
    %v156 = vpop.f32.mrb[0].mxu0
    %157 = vmatprep.mubr.bf16.mxu0 0
    %158 = vmatmul.mubr.bf16.gmra.mrb[0].mxu0 %v97
    %v159 = vpop.f32.mrb[0].mxu0
    %v160 = vadd.f32 0.0, %v159
    %v161 = vpop.f32.mrb[0].mxu0
    %v162 = vpop.f32.mrb[0].mxu0
    %v163 = vadd.f32 0.0, %v162
    %v164 = vpop.f32.mrb[0].mxu0
    %165 = vmatprep.mubr.bf16.mxu0 0
    %166 = vmatmul.mubr.bf16.gmra.mrb[0].mxu0 %v100
    %v167 = vpop.f32.mrb[0].mxu0
    %v168 = vadd.f32 0.0, %v167
    %v169 = vpop.f32.mrb[0].mxu0
    %v170 = vpop.f32.mrb[0].mxu0
    %v171 = vadd.f32 0.0, %v170
    %v172 = vpop.f32.mrb[0].mxu0
    %173 = vmatprep.mubr.bf16.mxu0 0
    %174 = vmatmul.mubr.bf16.gmra.mrb[0].mxu0 %v103
    %v175 = vpop.f32.mrb[0].mxu0
    %v176 = vadd.f32 0.0, %v175
    %v177 = vpop.f32.mrb[0].mxu0
    %v178 = vpop.f32.mrb[0].mxu0
    %v179 = vadd.f32 0.0, %v178
    %v180 = vpop.f32.mrb[0].mxu0
    %181 = vmatprep.mubr.bf16.mxu0 0
    %182 = vmatmul.mubr.bf16.gmra.mrb[0].mxu0 %v106
    %v183 = vpop.f32.mrb[0].mxu0
    %v184 = vadd.f32 0.0, %v183
    %v185 = vpop.f32.mrb[0].mxu0
    %v186 = vpop.f32.mrb[0].mxu0
    %v187 = vadd.f32 0.0, %v186
    %v188 = vpop.f32.mrb[0].mxu0
    %189 = vmatprep.mubr.bf16.mxu0 0
    %190 = vmatmul.mubr.bf16.gmra.mrb[0].mxu0 %v109
    %v191 = vpop.f32.mrb[0].mxu0
    %v192 = vadd.f32 0.0, %v191
    %v193 = vpop.f32.mrb[0].mxu0
    %v194 = vpop.f32.mrb[0].mxu0
    %v195 = vadd.f32 0.0, %v194
    %v196 = vpop.f32.mrb[0].mxu0
    %197 = vmatprep.mubr.bf16.mxu0 0
    %198 = vmatmul.mubr.bf16.gmra.mrb[0].mxu0 %v112
    %v199 = vpop.f32.mrb[0].mxu0
    %v200 = vadd.f32 0.0, %v199
    %v201 = vpop.f32.mrb[0].mxu0
    %v202 = vpop.f32.mrb[0].mxu0
    %v203 = vadd.f32 0.0, %v202
    %v204 = vpop.f32.mrb[0].mxu0
    %205 = vmatprep.mubr.bf16.mxu0 0
    %206 = vmatmul.mubr.bf16.gmra.mrb[0].mxu0 %v115
    %v207 = vpop.f32.mrb[0].mxu0
    %v208 = vadd.f32 0.0, %v207
    %v209 = vpop.f32.mrb[0].mxu0
    %v210 = vpop.f32.mrb[0].mxu0
    %v211 = vadd.f32 0.0, %v210
    %v212 = vpop.f32.mrb[0].mxu0
    %213 = vdwg.mxu0
    %v214 = vtanh.pop %v152
    %v215 = vtanh.pop %v155
    %v216 = vtanh.pop %v160
    %v217 = vtanh.pop %v163
    %v218 = vtanh.pop %v168
    %v219 = vtanh.pop %v171
    %v220 = vtanh.pop %v176
    %v221 = vtanh.pop %v179
    %v222 = vtanh.pop %v184
    %v223 = vtanh.pop %v187
    %v224 = vtanh.pop %v192
    %v225 = vtanh.pop %v195
    %v226 = vtanh.pop %v200
    %v227 = vtanh.pop %v203
    %v228 = vtanh.pop %v208
    %v229 = vtanh.pop %v211
    %v230 = vpack.c.bf16 %v215, %v214
    %v231 = vpack.c.bf16 %v217, %v216
    %v232 = vpack.c.bf16 %v219, %v218
    %v233 = vpack.c.bf16 %v221, %v220
    %v234 = vpack.c.bf16 %v223, %v222
    %v235 = vpack.c.bf16 %v225, %v224
    %v236 = vpack.c.bf16 %v227, %v226
    %v237 = vpack.c.bf16 %v229, %v228
    %v238 = vld [vmem:[%s3] sm:$0xf]
    %v239 = vld [vmem:[%s3 + $0x4] sm:$0xf]
    %v240 = vld [vmem:[%s3 + $0x8] sm:$0xf]
    %v241 = vld [vmem:[%s3 + $0xc] sm:$0xf]
    %v246 = vunpack.c.l.b16 %v238
    %v247 = vunpack.c.l.b16 %v239
    %v248 = vunpack.c.l.b16 %v240
    %v249 = vunpack.c.l.b16 %v241
    %v250 = vpack.c.b16 %v247, %v246
    %v251 = vpack.c.b16 %v249, %v248
    %v255 = vsel %vm92, %v230, 0
    %v258 = vsel %vm92, %v231, 0
    %v261 = vsel %vm92, %v232, 0
    %v264 = vsel %vm92, %v233, 0
    %v267 = vsel %vm92, %v234, 0
    %v270 = vsel %vm92, %v235, 0
    %v273 = vsel %vm92, %v236, 0
    %v276 = vsel %vm92, %v237, 0
    %278 = vmatprep.subr.bf16.mxu0 0
    %279 = vmatpush1.bf16.msra.mxu0 %v250
    %280 = vmatprep.subr.bf16.mxu0 0
    %281 = vmatpush1.bf16.msra.mxu0 %v251
    %282 = vmatprep.subr.bf16.mxu0 0
    %283 = vmatpush1.bf16.msra.mxu0 0
    %284 = vmatprep.subr.bf16.mxu0 0
    %285 = vmatpush1.bf16.msra.mxu0 0
    %286 = vmatprep.subr.bf16.mxu0 0
    %287 = vmatpush1.bf16.msra.mxu0 0
    %288 = vmatprep.subr.bf16.mxu0 0
    %289 = vmatpush1.bf16.msra.mxu0 0
    %290 = vmatprep.subr.bf16.mxu0 0
    %291 = vmatpush1.bf16.msra.mxu0 0
    %292 = vmatprep.subr.bf16.mxu0 0
    %293 = vmatpush1.bf16.msra.mxu0 0
    %294 = vmatprep.subr.bf16.mxu0 0
    %295 = vmatpush1.bf16.msra.mxu0 0
    %296 = vmatprep.subr.bf16.mxu0 0
    %297 = vmatpush1.bf16.msra.mxu0 0
    %298 = vmatprep.subr.bf16.mxu0 0
    %299 = vmatpush1.bf16.msra.mxu0 0
    %300 = vmatprep.subr.bf16.mxu0 0
    %301 = vmatpush1.bf16.msra.mxu0 0
    %302 = vmatprep.subr.bf16.mxu0 0
    %303 = vmatpush1.bf16.msra.mxu0 0
    %304 = vmatprep.subr.bf16.mxu0 0
    %305 = vmatpush1.bf16.msra.mxu0 0
    %306 = vmatprep.subr.bf16.mxu0 0
    %307 = vmatpush1.bf16.msra.mxu0 0
    %308 = vmatprep.subr.bf16.mxu0 0
    %309 = vmatpush1.bf16.msra.mxu0 0
    %310 = vmatprep.mubr.bf16.mxu0 0
    %311 = vmatmul.mubr.bf16.gmra.mrb[0].mxu0 %v255
    %v312 = vpop.f32.mrb[0].mxu0
    %v313 = vadd.f32 0.0, %v312
    %v314 = vpop.f32.mrb[0].mxu0
    %v315 = vpop.f32.mrb[0].mxu0
    %v316 = vadd.f32 0.0, %v315
    %v317 = vpop.f32.mrb[0].mxu0
    %318 = vmatprep.mubr.bf16.mxu0 0
    %319 = vmatmul.mubr.bf16.gmra.mrb[0].mxu0 %v258
    %v320 = vpop.f32.mrb[0].mxu0
    %v321 = vadd.f32 0.0, %v320
    %v322 = vpop.f32.mrb[0].mxu0
    %v323 = vpop.f32.mrb[0].mxu0
    %v324 = vadd.f32 0.0, %v323
    %v325 = vpop.f32.mrb[0].mxu0
    %326 = vmatprep.mubr.bf16.mxu0 0
    %327 = vmatmul.mubr.bf16.gmra.mrb[0].mxu0 %v261
    %v328 = vpop.f32.mrb[0].mxu0
    %v329 = vadd.f32 0.0, %v328
    %v330 = vpop.f32.mrb[0].mxu0
    %v331 = vpop.f32.mrb[0].mxu0
    %v332 = vadd.f32 0.0, %v331
    %v333 = vpop.f32.mrb[0].mxu0
    %334 = vmatprep.mubr.bf16.mxu0 0
    %335 = vmatmul.mubr.bf16.gmra.mrb[0].mxu0 %v264
    %v336 = vpop.f32.mrb[0].mxu0
    %v337 = vadd.f32 0.0, %v336
    %v338 = vpop.f32.mrb[0].mxu0
    %v339 = vpop.f32.mrb[0].mxu0
    %v340 = vadd.f32 0.0, %v339
    %v341 = vpop.f32.mrb[0].mxu0
    %342 = vmatprep.mubr.bf16.mxu0 0
    %343 = vmatmul.mubr.bf16.gmra.mrb[0].mxu0 %v267
    %v344 = vpop.f32.mrb[0].mxu0
    %v345 = vadd.f32 0.0, %v344
    %v346 = vpop.f32.mrb[0].mxu0
    %v347 = vpop.f32.mrb[0].mxu0
    %v348 = vadd.f32 0.0, %v347
    %v349 = vpop.f32.mrb[0].mxu0
    %350 = vmatprep.mubr.bf16.mxu0 0
    %351 = vmatmul.mubr.bf16.gmra.mrb[0].mxu0 %v270
    %v352 = vpop.f32.mrb[0].mxu0
    %v353 = vadd.f32 0.0, %v352
    %v354 = vpop.f32.mrb[0].mxu0
    %v355 = vpop.f32.mrb[0].mxu0
    %v356 = vadd.f32 0.0, %v355
    %v357 = vpop.f32.mrb[0].mxu0
    %358 = vmatprep.mubr.bf16.mxu0 0
    %359 = vmatmul.mubr.bf16.gmra.mrb[0].mxu0 %v273
    %v360 = vpop.f32.mrb[0].mxu0
    %v361 = vadd.f32 0.0, %v360
    %v362 = vpop.f32.mrb[0].mxu0
    %v363 = vpop.f32.mrb[0].mxu0
    %v364 = vadd.f32 0.0, %v363
    %v365 = vpop.f32.mrb[0].mxu0
    %366 = vmatprep.mubr.bf16.mxu0 0
    %367 = vmatmul.mubr.bf16.gmra.mrb[0].mxu0 %v276
    %v368 = vpop.f32.mrb[0].mxu0
    %v369 = vadd.f32 0.0, %v368
    %v370 = vpop.f32.mrb[0].mxu0
    %v371 = vpop.f32.mrb[0].mxu0
    %v372 = vadd.f32 0.0, %v371
    %v373 = vpop.f32.mrb[0].mxu0
    %374 = vdwg.mxu0
    %v375 = vlaneseq
    %v376 = vand.u32 %v375, 127
    %377 = vmax.xlane.f32.xlu0 %v313
    %v378 = vpop.xlane.xlu0 %377
    %379 = vmax.xlane.f32.xlu0 %v316
    %v380 = vpop.xlane.xlu0 %379
    %381 = vmax.xlane.f32.xlu0 %v321
    %v382 = vpop.xlane.xlu0 %381
    %383 = vmax.xlane.f32.xlu0 %v324
    %v384 = vpop.xlane.xlu0 %383
    %385 = vmax.xlane.f32.xlu0 %v329
    %v386 = vpop.xlane.xlu0 %385
    %387 = vmax.xlane.f32.xlu0 %v332
    %v388 = vpop.xlane.xlu0 %387
    %389 = vmax.xlane.f32.xlu0 %v337
    %v390 = vpop.xlane.xlu0 %389
    %391 = vmax.xlane.f32.xlu0 %v340
    %v392 = vpop.xlane.xlu0 %391
    %393 = vmax.xlane.f32.xlu0 %v345
    %v394 = vpop.xlane.xlu0 %393
    %395 = vmax.xlane.f32.xlu0 %v348
    %v396 = vpop.xlane.xlu0 %395
    %397 = vmax.xlane.f32.xlu0 %v353
    %v398 = vpop.xlane.xlu0 %397
    %399 = vmax.xlane.f32.xlu0 %v356
    %v400 = vpop.xlane.xlu0 %399
    %401 = vmax.xlane.f32.xlu0 %v361
    %v402 = vpop.xlane.xlu0 %401
    %403 = vmax.xlane.f32.xlu0 %v364
    %v404 = vpop.xlane.xlu0 %403
    %405 = vmax.xlane.f32.xlu0 %v369
    %v406 = vpop.xlane.xlu0 %405
    %407 = vmax.xlane.f32.xlu0 %v372
    %v408 = vpop.xlane.xlu0 %407
    %vm409 = vcmp.eq.f32.partialorder %v313, %v378
    %vm410 = vcmp.eq.f32.partialorder %v316, %v380
    %vm411 = vcmp.eq.f32.partialorder %v321, %v382
    %vm412 = vcmp.eq.f32.partialorder %v324, %v384
    %vm413 = vcmp.eq.f32.partialorder %v329, %v386
    %vm414 = vcmp.eq.f32.partialorder %v332, %v388
    %vm415 = vcmp.eq.f32.partialorder %v337, %v390
    %vm416 = vcmp.eq.f32.partialorder %v340, %v392
    %vm417 = vcmp.eq.f32.partialorder %v345, %v394
    %vm418 = vcmp.eq.f32.partialorder %v348, %v396
    %vm419 = vcmp.eq.f32.partialorder %v353, %v398
    %vm420 = vcmp.eq.f32.partialorder %v356, %v400
    %vm421 = vcmp.eq.f32.partialorder %v361, %v402
    %vm422 = vcmp.eq.f32.partialorder %v364, %v404
    %vm423 = vcmp.eq.f32.partialorder %v369, %v406
    %vm424 = vcmp.eq.f32.partialorder %v372, %v408
    %v425 = vsel %vm409, %v376, 128
    %v426 = vsel %vm410, %v376, 128
    %v427 = vsel %vm411, %v376, 128
    %v428 = vsel %vm412, %v376, 128
    %v429 = vsel %vm413, %v376, 128
    %v430 = vsel %vm414, %v376, 128
    %v431 = vsel %vm415, %v376, 128
    %v432 = vsel %vm416, %v376, 128
    %v433 = vsel %vm417, %v376, 128
    %v434 = vsel %vm418, %v376, 128
    %v435 = vsel %vm419, %v376, 128
    %v436 = vsel %vm420, %v376, 128
    %v437 = vsel %vm421, %v376, 128
    %v438 = vsel %vm422, %v376, 128
    %v439 = vsel %vm423, %v376, 128
    %v440 = vsel %vm424, %v376, 128
    %v441 = vand.u32 %v425, 65535
    %v442 = vshra.s32 %v425, 16
    %v443 = vcvt.s32.f32 %v441
    %v444 = vcvt.s32.f32 %v442
    %445 = vmin.xlane.f32.xlu0 %v444
    %v446 = vpop.xlane.xlu0 %445
    %vm447 = vcmp.eq.f32.partialorder %v444, %v446
    %v448 = vsel %vm447, %v443, inf
    %449 = vmin.xlane.f32.xlu0 %v448
    %v450 = vpop.xlane.xlu0 %449
    %v451 = vcvt.f32.s32 %v450
    %v452 = vcvt.f32.s32 %v446
    %v453 = vshll.u32 %v452, 16
    %v454 = vadd.s32 %v453, %v451
    %v455 = vand.u32 %v426, 65535
    %v456 = vshra.s32 %v426, 16
    %v457 = vcvt.s32.f32 %v455
    %v458 = vcvt.s32.f32 %v456
    %459 = vmin.xlane.f32.xlu0 %v458
    %v460 = vpop.xlane.xlu0 %459
    %vm461 = vcmp.eq.f32.partialorder %v458, %v460
    %v462 = vsel %vm461, %v457, inf
    %463 = vmin.xlane.f32.xlu0 %v462
    %v464 = vpop.xlane.xlu0 %463
    %v465 = vcvt.f32.s32 %v464
    %v466 = vcvt.f32.s32 %v460
    %v467 = vshll.u32 %v466, 16
    %v468 = vadd.s32 %v467, %v465
    %v469 = vand.u32 %v427, 65535
    %v470 = vshra.s32 %v427, 16
    %v471 = vcvt.s32.f32 %v469
    %v472 = vcvt.s32.f32 %v470
    %473 = vmin.xlane.f32.xlu0 %v472
    %v474 = vpop.xlane.xlu0 %473
    %vm475 = vcmp.eq.f32.partialorder %v472, %v474
    %v476 = vsel %vm475, %v471, inf
    %477 = vmin.xlane.f32.xlu0 %v476
    %v478 = vpop.xlane.xlu0 %477
    %v479 = vcvt.f32.s32 %v478
    %v480 = vcvt.f32.s32 %v474
    %v481 = vshll.u32 %v480, 16
    %v482 = vadd.s32 %v481, %v479
    %v483 = vand.u32 %v428, 65535
    %v484 = vshra.s32 %v428, 16
    %v485 = vcvt.s32.f32 %v483
    %v486 = vcvt.s32.f32 %v484
    %487 = vmin.xlane.f32.xlu0 %v486
    %v488 = vpop.xlane.xlu0 %487
    %vm489 = vcmp.eq.f32.partialorder %v486, %v488
    %v490 = vsel %vm489, %v485, inf
    %491 = vmin.xlane.f32.xlu0 %v490
    %v492 = vpop.xlane.xlu0 %491
    %v493 = vcvt.f32.s32 %v492
    %v494 = vcvt.f32.s32 %v488
    %v495 = vshll.u32 %v494, 16
    %v496 = vadd.s32 %v495, %v493
    %v497 = vand.u32 %v429, 65535
    %v498 = vshra.s32 %v429, 16
    %v499 = vcvt.s32.f32 %v497
    %v500 = vcvt.s32.f32 %v498
    %501 = vmin.xlane.f32.xlu0 %v500
    %v502 = vpop.xlane.xlu0 %501
    %vm503 = vcmp.eq.f32.partialorder %v500, %v502
    %v504 = vsel %vm503, %v499, inf
    %505 = vmin.xlane.f32.xlu0 %v504
    %v506 = vpop.xlane.xlu0 %505
    %v507 = vcvt.f32.s32 %v506
    %v508 = vcvt.f32.s32 %v502
    %v509 = vshll.u32 %v508, 16
    %v510 = vadd.s32 %v509, %v507
    %v511 = vand.u32 %v430, 65535
    %v512 = vshra.s32 %v430, 16
    %v513 = vcvt.s32.f32 %v511
    %v514 = vcvt.s32.f32 %v512
    %515 = vmin.xlane.f32.xlu0 %v514
    %v516 = vpop.xlane.xlu0 %515
    %vm517 = vcmp.eq.f32.partialorder %v514, %v516
    %v518 = vsel %vm517, %v513, inf
    %519 = vmin.xlane.f32.xlu0 %v518
    %v520 = vpop.xlane.xlu0 %519
    %v521 = vcvt.f32.s32 %v520
    %v522 = vcvt.f32.s32 %v516
    %v523 = vshll.u32 %v522, 16
    %v524 = vadd.s32 %v523, %v521
    %v525 = vand.u32 %v431, 65535
    %v526 = vshra.s32 %v431, 16
    %v527 = vcvt.s32.f32 %v525
    %v528 = vcvt.s32.f32 %v526
    %529 = vmin.xlane.f32.xlu0 %v528
    %v530 = vpop.xlane.xlu0 %529
    %vm531 = vcmp.eq.f32.partialorder %v528, %v530
    %v532 = vsel %vm531, %v527, inf
    %533 = vmin.xlane.f32.xlu0 %v532
    %v534 = vpop.xlane.xlu0 %533
    %v535 = vcvt.f32.s32 %v534
    %v536 = vcvt.f32.s32 %v530
    %v537 = vshll.u32 %v536, 16
    %v538 = vadd.s32 %v537, %v535
    %v539 = vand.u32 %v432, 65535
    %v540 = vshra.s32 %v432, 16
    %v541 = vcvt.s32.f32 %v539
    %v542 = vcvt.s32.f32 %v540
    %543 = vmin.xlane.f32.xlu0 %v542
    %v544 = vpop.xlane.xlu0 %543
    %vm545 = vcmp.eq.f32.partialorder %v542, %v544
    %v546 = vsel %vm545, %v541, inf
    %547 = vmin.xlane.f32.xlu0 %v546
    %v548 = vpop.xlane.xlu0 %547
    %v549 = vcvt.f32.s32 %v548
    %v550 = vcvt.f32.s32 %v544
    %v551 = vshll.u32 %v550, 16
    %v552 = vadd.s32 %v551, %v549
    %v553 = vand.u32 %v433, 65535
    %v554 = vshra.s32 %v433, 16
    %v555 = vcvt.s32.f32 %v553
    %v556 = vcvt.s32.f32 %v554
    %557 = vmin.xlane.f32.xlu0 %v556
    %v558 = vpop.xlane.xlu0 %557
    %vm559 = vcmp.eq.f32.partialorder %v556, %v558
    %v560 = vsel %vm559, %v555, inf
    %561 = vmin.xlane.f32.xlu0 %v560
    %v562 = vpop.xlane.xlu0 %561
    %v563 = vcvt.f32.s32 %v562
    %v564 = vcvt.f32.s32 %v558
    %v565 = vshll.u32 %v564, 16
    %v566 = vadd.s32 %v565, %v563
    %v567 = vand.u32 %v434, 65535
    %v568 = vshra.s32 %v434, 16
    %v569 = vcvt.s32.f32 %v567
    %v570 = vcvt.s32.f32 %v568
    %571 = vmin.xlane.f32.xlu0 %v570
    %v572 = vpop.xlane.xlu0 %571
    %vm573 = vcmp.eq.f32.partialorder %v570, %v572
    %v574 = vsel %vm573, %v569, inf
    %575 = vmin.xlane.f32.xlu0 %v574
    %v576 = vpop.xlane.xlu0 %575
    %v577 = vcvt.f32.s32 %v576
    %v578 = vcvt.f32.s32 %v572
    %v579 = vshll.u32 %v578, 16
    %v580 = vadd.s32 %v579, %v577
    %v581 = vand.u32 %v435, 65535
    %v582 = vshra.s32 %v435, 16
    %v583 = vcvt.s32.f32 %v581
    %v584 = vcvt.s32.f32 %v582
    %585 = vmin.xlane.f32.xlu0 %v584
    %v586 = vpop.xlane.xlu0 %585
    %vm587 = vcmp.eq.f32.partialorder %v584, %v586
    %v588 = vsel %vm587, %v583, inf
    %589 = vmin.xlane.f32.xlu0 %v588
    %v590 = vpop.xlane.xlu0 %589
    %v591 = vcvt.f32.s32 %v590
    %v592 = vcvt.f32.s32 %v586
    %v593 = vshll.u32 %v592, 16
    %v594 = vadd.s32 %v593, %v591
    %v595 = vand.u32 %v436, 65535
    %v596 = vshra.s32 %v436, 16
    %v597 = vcvt.s32.f32 %v595
    %v598 = vcvt.s32.f32 %v596
    %599 = vmin.xlane.f32.xlu0 %v598
    %v600 = vpop.xlane.xlu0 %599
    %vm601 = vcmp.eq.f32.partialorder %v598, %v600
    %v602 = vsel %vm601, %v597, inf
    %603 = vmin.xlane.f32.xlu0 %v602
    %v604 = vpop.xlane.xlu0 %603
    %v605 = vcvt.f32.s32 %v604
    %v606 = vcvt.f32.s32 %v600
    %v607 = vshll.u32 %v606, 16
    %v608 = vadd.s32 %v607, %v605
    %v609 = vand.u32 %v437, 65535
    %v610 = vshra.s32 %v437, 16
    %v611 = vcvt.s32.f32 %v609
    %v612 = vcvt.s32.f32 %v610
    %613 = vmin.xlane.f32.xlu0 %v612
    %v614 = vpop.xlane.xlu0 %613
    %vm615 = vcmp.eq.f32.partialorder %v612, %v614
    %v616 = vsel %vm615, %v611, inf
    %617 = vmin.xlane.f32.xlu0 %v616
    %v618 = vpop.xlane.xlu0 %617
    %v619 = vcvt.f32.s32 %v618
    %v620 = vcvt.f32.s32 %v614
    %v621 = vshll.u32 %v620, 16
    %v622 = vadd.s32 %v621, %v619
    %v623 = vand.u32 %v438, 65535
    %v624 = vshra.s32 %v438, 16
    %v625 = vcvt.s32.f32 %v623
    %v626 = vcvt.s32.f32 %v624
    %627 = vmin.xlane.f32.xlu0 %v626
    %v628 = vpop.xlane.xlu0 %627
    %vm629 = vcmp.eq.f32.partialorder %v626, %v628
    %v630 = vsel %vm629, %v625, inf
    %631 = vmin.xlane.f32.xlu0 %v630
    %v632 = vpop.xlane.xlu0 %631
    %v633 = vcvt.f32.s32 %v632
    %v634 = vcvt.f32.s32 %v628
    %v635 = vshll.u32 %v634, 16
    %v636 = vadd.s32 %v635, %v633
    %v637 = vand.u32 %v439, 65535
    %v638 = vshra.s32 %v439, 16
    %v639 = vcvt.s32.f32 %v637
    %v640 = vcvt.s32.f32 %v638
    %641 = vmin.xlane.f32.xlu0 %v640
    %v642 = vpop.xlane.xlu0 %641
    %vm643 = vcmp.eq.f32.partialorder %v640, %v642
    %v644 = vsel %vm643, %v639, inf
    %645 = vmin.xlane.f32.xlu0 %v644
    %v646 = vpop.xlane.xlu0 %645
    %v647 = vcvt.f32.s32 %v646
    %v648 = vcvt.f32.s32 %v642
    %v649 = vshll.u32 %v648, 16
    %v650 = vadd.s32 %v649, %v647
    %v651 = vand.u32 %v440, 65535
    %v652 = vshra.s32 %v440, 16
    %v653 = vcvt.s32.f32 %v651
    %v654 = vcvt.s32.f32 %v652
    %655 = vmin.xlane.f32.xlu0 %v654
    %v656 = vpop.xlane.xlu0 %655
    %vm657 = vcmp.eq.f32.partialorder %v654, %v656
    %v658 = vsel %vm657, %v653, inf
    %659 = vmin.xlane.f32.xlu0 %v658
    %v660 = vpop.xlane.xlu0 %659
    %v661 = vcvt.f32.s32 %v660
    %v662 = vcvt.f32.s32 %v656
    %v663 = vshll.u32 %v662, 16
    %v664 = vadd.s32 %v663, %v661
    %v665 = vcvt.s32.f32 %v454
    %v666 = vcvt.s32.f32 %v468
    %v667 = vcvt.s32.f32 %v482
    %v668 = vcvt.s32.f32 %v496
    %v669 = vcvt.s32.f32 %v510
    %v670 = vcvt.s32.f32 %v524
    %v671 = vcvt.s32.f32 %v538
    %v672 = vcvt.s32.f32 %v552
    %v673 = vcvt.s32.f32 %v566
    %v674 = vcvt.s32.f32 %v580
    %v675 = vcvt.s32.f32 %v594
    %v676 = vcvt.s32.f32 %v608
    %v677 = vcvt.s32.f32 %v622
    %v678 = vcvt.s32.f32 %v636
    %v679 = vcvt.s32.f32 %v650
    %v680 = vcvt.s32.f32 %v664
    %681 = vset.pattern.permute.xlu0 3
    %682 = vperm.xlu0 %681, %v19
    %v683 = vpop.permute.xlu0 %682
    %vm684 = vcmp.eq.s32.totalorder %v376, %v683
    %v685 = vsel %vm684, 1, 0
    %v686 = vcvt.s32.f32 %v685
    %687 = vmatprep.subr.mxu0 0.0
    %688 = vmatpush1.msra.mxu0 %v665
    %689 = vmatprep.subr.mxu0 0.0
    %690 = vmatpush1.msra.mxu0 %v666
    %691 = vmatprep.subr.mxu0 0.0
    %692 = vmatpush1.msra.mxu0 %v667
    %693 = vmatprep.subr.mxu0 0.0
    %694 = vmatpush1.msra.mxu0 %v668
    %695 = vmatprep.subr.mxu0 0.0
    %696 = vmatpush1.msra.mxu0 %v669
    %697 = vmatprep.subr.mxu0 0.0
    %698 = vmatpush1.msra.mxu0 %v670
    %699 = vmatprep.subr.mxu0 0.0
    %700 = vmatpush1.msra.mxu0 %v671
    %701 = vmatprep.subr.mxu0 0.0
    %702 = vmatpush1.msra.mxu0 %v672
    %703 = vmatprep.subr.mxu0 0.0
    %704 = vmatpush1.msra.mxu0 %v673
    %705 = vmatprep.subr.mxu0 0.0
    %706 = vmatpush1.msra.mxu0 %v674
    %707 = vmatprep.subr.mxu0 0.0
    %708 = vmatpush1.msra.mxu0 %v675
    %709 = vmatprep.subr.mxu0 0.0
    %710 = vmatpush1.msra.mxu0 %v676
    %711 = vmatprep.subr.mxu0 0.0
    %712 = vmatpush1.msra.mxu0 %v677
    %713 = vmatprep.subr.mxu0 0.0
    %714 = vmatpush1.msra.mxu0 %v678
    %715 = vmatprep.subr.mxu0 0.0
    %716 = vmatpush1.msra.mxu0 %v679
    %717 = vmatprep.subr.mxu0 0.0
    %718 = vmatpush1.msra.mxu0 %v680
    %719 = vmatprep.subr.mxu0 0.0
    %720 = vmatpush1.msra.mxu0 0.0
    %721 = vmatprep.subr.mxu0 0.0
    %722 = vmatpush1.msra.mxu0 0.0
    %723 = vmatprep.subr.mxu0 0.0
    %724 = vmatpush1.msra.mxu0 0.0
    %725 = vmatprep.subr.mxu0 0.0
    %726 = vmatpush1.msra.mxu0 0.0
    %727 = vmatprep.subr.mxu0 0.0
    %728 = vmatpush1.msra.mxu0 0.0
    %729 = vmatprep.subr.mxu0 0.0
    %730 = vmatpush1.msra.mxu0 0.0
    %731 = vmatprep.subr.mxu0 0.0
    %732 = vmatpush1.msra.mxu0 0.0
    %733 = vmatprep.subr.mxu0 0.0
    %734 = vmatpush1.msra.mxu0 0.0
    %735 = vmatprep.subr.mxu0 0.0
    %736 = vmatpush1.msra.mxu0 0.0
    %737 = vmatprep.subr.mxu0 0.0
    %738 = vmatpush1.msra.mxu0 0.0
    %739 = vmatprep.subr.mxu0 0.0
    %740 = vmatpush1.msra.mxu0 0.0
    %741 = vmatprep.subr.mxu0 0.0
    %742 = vmatpush1.msra.mxu0 0.0
    %743 = vmatprep.subr.mxu0 0.0
    %744 = vmatpush1.msra.mxu0 0.0
    %745 = vmatprep.subr.mxu0 0.0
    %746 = vmatpush1.msra.mxu0 0.0
    %747 = vmatprep.subr.mxu0 0.0
    %748 = vmatpush1.msra.mxu0 0.0
    %749 = vmatprep.subr.mxu0 0.0
    %750 = vmatpush1.msra.mxu0 0.0
    %751 = vmatprep.mubr.f32.mxu0 0.0
    %752 = vmatmul.mubr.f32.gmra.mrb[0].mxu0 %v686
    %v753 = vpop.f32.mrb[0].mxu0
    %v754 = vadd.f32 0.0, %v753
    %v755 = vpop.f32.mrb[0].mxu0
    %756 = vdwg.mxu0
    %v757 = vcvt.f32.s32.to.zero.pseudo %v754
    %vm758 = vcmp.eq.s32.totalorder %v376, 0
    %759 = vset.pattern.permute.xlu0 0
    %760 = vperm.xlu0 %759, %v757
    %v761 = vpop.permute.xlu0 %760
    %v762 = vsel %vm758, %v761, 0
    %vm763 = vcmp.eq.s32.totalorder %v376, %v761
    %v764 = vsel %vm763, 1, 0
    %v765 = vcvt.s32.f32 %v764
    %766 = vmatprep.subr.mxu0 0.0
    %767 = vmatpush1.msra.mxu0 %v665
    %768 = vmatprep.subr.mxu0 0.0
    %769 = vmatpush1.msra.mxu0 %v666
    %770 = vmatprep.subr.mxu0 0.0
    %771 = vmatpush1.msra.mxu0 %v667
    %772 = vmatprep.subr.mxu0 0.0
    %773 = vmatpush1.msra.mxu0 %v668
    %774 = vmatprep.subr.mxu0 0.0
    %775 = vmatpush1.msra.mxu0 %v669
    %776 = vmatprep.subr.mxu0 0.0
    %777 = vmatpush1.msra.mxu0 %v670
    %778 = vmatprep.subr.mxu0 0.0
    %779 = vmatpush1.msra.mxu0 %v671
    %780 = vmatprep.subr.mxu0 0.0
    %781 = vmatpush1.msra.mxu0 %v672
    %782 = vmatprep.subr.mxu0 0.0
    %783 = vmatpush1.msra.mxu0 %v673
    %784 = vmatprep.subr.mxu0 0.0
    %785 = vmatpush1.msra.mxu0 %v674
    %786 = vmatprep.subr.mxu0 0.0
    %787 = vmatpush1.msra.mxu0 %v675
    %788 = vmatprep.subr.mxu0 0.0
    %789 = vmatpush1.msra.mxu0 %v676
    %790 = vmatprep.subr.mxu0 0.0
    %791 = vmatpush1.msra.mxu0 %v677
    %792 = vmatprep.subr.mxu0 0.0
    %793 = vmatpush1.msra.mxu0 %v678
    %794 = vmatprep.subr.mxu0 0.0
    %795 = vmatpush1.msra.mxu0 %v679
    %796 = vmatprep.subr.mxu0 0.0
    %797 = vmatpush1.msra.mxu0 %v680
    %798 = vmatprep.subr.mxu0 0.0
    %799 = vmatpush1.msra.mxu0 0.0
    %800 = vmatprep.subr.mxu0 0.0
    %801 = vmatpush1.msra.mxu0 0.0
    %802 = vmatprep.subr.mxu0 0.0
    %803 = vmatpush1.msra.mxu0 0.0
    %804 = vmatprep.subr.mxu0 0.0
    %805 = vmatpush1.msra.mxu0 0.0
    %806 = vmatprep.subr.mxu0 0.0
    %807 = vmatpush1.msra.mxu0 0.0
    %808 = vmatprep.subr.mxu0 0.0
    %809 = vmatpush1.msra.mxu0 0.0
    %810 = vmatprep.subr.mxu0 0.0
    %811 = vmatpush1.msra.mxu0 0.0
    %812 = vmatprep.subr.mxu0 0.0
    %813 = vmatpush1.msra.mxu0 0.0
    %814 = vmatprep.subr.mxu0 0.0
    %815 = vmatpush1.msra.mxu0 0.0
    %816 = vmatprep.subr.mxu0 0.0
    %817 = vmatpush1.msra.mxu0 0.0
    %818 = vmatprep.subr.mxu0 0.0
    %819 = vmatpush1.msra.mxu0 0.0
    %820 = vmatprep.subr.mxu0 0.0
    %821 = vmatpush1.msra.mxu0 0.0
    %822 = vmatprep.subr.mxu0 0.0
    %823 = vmatpush1.msra.mxu0 0.0
    %824 = vmatprep.subr.mxu0 0.0
    %825 = vmatpush1.msra.mxu0 0.0
    %826 = vmatprep.subr.mxu0 0.0
    %827 = vmatpush1.msra.mxu0 0.0
    %828 = vmatprep.subr.mxu0 0.0
    %829 = vmatpush1.msra.mxu0 0.0
    %830 = vmatprep.mubr.f32.mxu0 0.0
    %831 = vmatmul.mubr.f32.gmra.mrb[0].mxu0 %v765
    %v832 = vpop.f32.mrb[0].mxu0
    %v833 = vadd.f32 0.0, %v832
    %v834 = vpop.f32.mrb[0].mxu0
    %835 = vdwg.mxu0
    %v836 = vcvt.f32.s32.to.zero.pseudo %v833
    %vm837 = vcmp.eq.s32.totalorder %v376, 1
    %838 = vset.pattern.permute.xlu0 0
    %839 = vperm.xlu0 %838, %v836
    %v840 = vpop.permute.xlu0 %839
    %v841 = vsel %vm837, %v840, %v762
    %vm842 = vcmp.eq.s32.totalorder %v376, %v840
    %v843 = vsel %vm842, 1, 0
    %v844 = vcvt.s32.f32 %v843
    %845 = vmatprep.subr.mxu0 0.0
    %846 = vmatpush1.msra.mxu0 %v665
    %847 = vmatprep.subr.mxu0 0.0
    %848 = vmatpush1.msra.mxu0 %v666
    %849 = vmatprep.subr.mxu0 0.0
    %850 = vmatpush1.msra.mxu0 %v667
    %851 = vmatprep.subr.mxu0 0.0
    %852 = vmatpush1.msra.mxu0 %v668
    %853 = vmatprep.subr.mxu0 0.0
    %854 = vmatpush1.msra.mxu0 %v669
    %855 = vmatprep.subr.mxu0 0.0
    %856 = vmatpush1.msra.mxu0 %v670
    %857 = vmatprep.subr.mxu0 0.0
    %858 = vmatpush1.msra.mxu0 %v671
    %859 = vmatprep.subr.mxu0 0.0
    %860 = vmatpush1.msra.mxu0 %v672
    %861 = vmatprep.subr.mxu0 0.0
    %862 = vmatpush1.msra.mxu0 %v673
    %863 = vmatprep.subr.mxu0 0.0
    %864 = vmatpush1.msra.mxu0 %v674
    %865 = vmatprep.subr.mxu0 0.0
    %866 = vmatpush1.msra.mxu0 %v675
    %867 = vmatprep.subr.mxu0 0.0
    %868 = vmatpush1.msra.mxu0 %v676
    %869 = vmatprep.subr.mxu0 0.0
    %870 = vmatpush1.msra.mxu0 %v677
    %871 = vmatprep.subr.mxu0 0.0
    %872 = vmatpush1.msra.mxu0 %v678
    %873 = vmatprep.subr.mxu0 0.0
    %874 = vmatpush1.msra.mxu0 %v679
    %875 = vmatprep.subr.mxu0 0.0
    %876 = vmatpush1.msra.mxu0 %v680
    %877 = vmatprep.subr.mxu0 0.0
    %878 = vmatpush1.msra.mxu0 0.0
    %879 = vmatprep.subr.mxu0 0.0
    %880 = vmatpush1.msra.mxu0 0.0
    %881 = vmatprep.subr.mxu0 0.0
    %882 = vmatpush1.msra.mxu0 0.0
    %883 = vmatprep.subr.mxu0 0.0
    %884 = vmatpush1.msra.mxu0 0.0
    %885 = vmatprep.subr.mxu0 0.0
    %886 = vmatpush1.msra.mxu0 0.0
    %887 = vmatprep.subr.mxu0 0.0
    %888 = vmatpush1.msra.mxu0 0.0
    %889 = vmatprep.subr.mxu0 0.0
    %890 = vmatpush1.msra.mxu0 0.0
    %891 = vmatprep.subr.mxu0 0.0
    %892 = vmatpush1.msra.mxu0 0.0
    %893 = vmatprep.subr.mxu0 0.0
    %894 = vmatpush1.msra.mxu0 0.0
    %895 = vmatprep.subr.mxu0 0.0
    %896 = vmatpush1.msra.mxu0 0.0
    %897 = vmatprep.subr.mxu0 0.0
    %898 = vmatpush1.msra.mxu0 0.0
    %899 = vmatprep.subr.mxu0 0.0
    %900 = vmatpush1.msra.mxu0 0.0
    %901 = vmatprep.subr.mxu0 0.0
    %902 = vmatpush1.msra.mxu0 0.0
    %903 = vmatprep.subr.mxu0 0.0
    %904 = vmatpush1.msra.mxu0 0.0
    %905 = vmatprep.subr.mxu0 0.0
    %906 = vmatpush1.msra.mxu0 0.0
    %907 = vmatprep.subr.mxu0 0.0
    %908 = vmatpush1.msra.mxu0 0.0
    %909 = vmatprep.mubr.f32.mxu0 0.0
    %910 = vmatmul.mubr.f32.gmra.mrb[0].mxu0 %v844
    %v911 = vpop.f32.mrb[0].mxu0
    %v912 = vadd.f32 0.0, %v911
    %v913 = vpop.f32.mrb[0].mxu0
    %914 = vdwg.mxu0
    %v915 = vcvt.f32.s32.to.zero.pseudo %v912
    %vm916 = vcmp.eq.s32.totalorder %v376, 2
    %917 = vset.pattern.permute.xlu0 0
    %918 = vperm.xlu0 %917, %v915
    %v919 = vpop.permute.xlu0 %918
    %v920 = vsel %vm916, %v919, %v841
    %vm921 = vcmp.eq.s32.totalorder %v376, %v919
    %v922 = vsel %vm921, 1, 0
    %v923 = vcvt.s32.f32 %v922
    %924 = vmatprep.subr.mxu0 0.0
    %925 = vmatpush1.msra.mxu0 %v665
    %926 = vmatprep.subr.mxu0 0.0
    %927 = vmatpush1.msra.mxu0 %v666
    %928 = vmatprep.subr.mxu0 0.0
    %929 = vmatpush1.msra.mxu0 %v667
    %930 = vmatprep.subr.mxu0 0.0
    %931 = vmatpush1.msra.mxu0 %v668
    %932 = vmatprep.subr.mxu0 0.0
    %933 = vmatpush1.msra.mxu0 %v669
    %934 = vmatprep.subr.mxu0 0.0
    %935 = vmatpush1.msra.mxu0 %v670
    %936 = vmatprep.subr.mxu0 0.0
    %937 = vmatpush1.msra.mxu0 %v671
    %938 = vmatprep.subr.mxu0 0.0
    %939 = vmatpush1.msra.mxu0 %v672
    %940 = vmatprep.subr.mxu0 0.0
    %941 = vmatpush1.msra.mxu0 %v673
    %942 = vmatprep.subr.mxu0 0.0
    %943 = vmatpush1.msra.mxu0 %v674
    %944 = vmatprep.subr.mxu0 0.0
    %945 = vmatpush1.msra.mxu0 %v675
    %946 = vmatprep.subr.mxu0 0.0
    %947 = vmatpush1.msra.mxu0 %v676
    %948 = vmatprep.subr.mxu0 0.0
    %949 = vmatpush1.msra.mxu0 %v677
    %950 = vmatprep.subr.mxu0 0.0
    %951 = vmatpush1.msra.mxu0 %v678
    %952 = vmatprep.subr.mxu0 0.0
    %953 = vmatpush1.msra.mxu0 %v679
    %954 = vmatprep.subr.mxu0 0.0
    %955 = vmatpush1.msra.mxu0 %v680
    %956 = vmatprep.subr.mxu0 0.0
    %957 = vmatpush1.msra.mxu0 0.0
    %958 = vmatprep.subr.mxu0 0.0
    %959 = vmatpush1.msra.mxu0 0.0
    %960 = vmatprep.subr.mxu0 0.0
    %961 = vmatpush1.msra.mxu0 0.0
    %962 = vmatprep.subr.mxu0 0.0
    %963 = vmatpush1.msra.mxu0 0.0
    %964 = vmatprep.subr.mxu0 0.0
    %965 = vmatpush1.msra.mxu0 0.0
    %966 = vmatprep.subr.mxu0 0.0
    %967 = vmatpush1.msra.mxu0 0.0
    %968 = vmatprep.subr.mxu0 0.0
    %969 = vmatpush1.msra.mxu0 0.0
    %970 = vmatprep.subr.mxu0 0.0
    %971 = vmatpush1.msra.mxu0 0.0
    %972 = vmatprep.subr.mxu0 0.0
    %973 = vmatpush1.msra.mxu0 0.0
    %974 = vmatprep.subr.mxu0 0.0
    %975 = vmatpush1.msra.mxu0 0.0
    %976 = vmatprep.subr.mxu0 0.0
    %977 = vmatpush1.msra.mxu0 0.0
    %978 = vmatprep.subr.mxu0 0.0
    %979 = vmatpush1.msra.mxu0 0.0
    %980 = vmatprep.subr.mxu0 0.0
    %981 = vmatpush1.msra.mxu0 0.0
    %982 = vmatprep.subr.mxu0 0.0
    %983 = vmatpush1.msra.mxu0 0.0
    %984 = vmatprep.subr.mxu0 0.0
    %985 = vmatpush1.msra.mxu0 0.0
    %986 = vmatprep.subr.mxu0 0.0
    %987 = vmatpush1.msra.mxu0 0.0
    %988 = vmatprep.mubr.f32.mxu0 0.0
    %989 = vmatmul.mubr.f32.gmra.mrb[0].mxu0 %v923
    %v990 = vpop.f32.mrb[0].mxu0
    %v991 = vadd.f32 0.0, %v990
    %v992 = vpop.f32.mrb[0].mxu0
    %993 = vdwg.mxu0
    %v994 = vcvt.f32.s32.to.zero.pseudo %v991
    %vm995 = vcmp.eq.s32.totalorder %v376, 3
    %996 = vset.pattern.permute.xlu0 0
    %997 = vperm.xlu0 %996, %v994
    %v998 = vpop.permute.xlu0 %997
    %v999 = vsel %vm995, %v998, %v920
    %vm1000 = vcmp.eq.s32.totalorder %v376, %v998
    %v1001 = vsel %vm1000, 1, 0
    %v1002 = vcvt.s32.f32 %v1001
    %1003 = vmatprep.subr.mxu0 0.0
    %1004 = vmatpush1.msra.mxu0 %v665
    %1005 = vmatprep.subr.mxu0 0.0
    %1006 = vmatpush1.msra.mxu0 %v666
    %1007 = vmatprep.subr.mxu0 0.0
    %1008 = vmatpush1.msra.mxu0 %v667
    %1009 = vmatprep.subr.mxu0 0.0
    %1010 = vmatpush1.msra.mxu0 %v668
    %1011 = vmatprep.subr.mxu0 0.0
    %1012 = vmatpush1.msra.mxu0 %v669
    %1013 = vmatprep.subr.mxu0 0.0
    %1014 = vmatpush1.msra.mxu0 %v670
    %1015 = vmatprep.subr.mxu0 0.0
    %1016 = vmatpush1.msra.mxu0 %v671
    %1017 = vmatprep.subr.mxu0 0.0
    %1018 = vmatpush1.msra.mxu0 %v672
    %1019 = vmatprep.subr.mxu0 0.0
    %1020 = vmatpush1.msra.mxu0 %v673
    %1021 = vmatprep.subr.mxu0 0.0
    %1022 = vmatpush1.msra.mxu0 %v674
    %1023 = vmatprep.subr.mxu0 0.0
    %1024 = vmatpush1.msra.mxu0 %v675
    %1025 = vmatprep.subr.mxu0 0.0
    %1026 = vmatpush1.msra.mxu0 %v676
    %1027 = vmatprep.subr.mxu0 0.0
    %1028 = vmatpush1.msra.mxu0 %v677
    %1029 = vmatprep.subr.mxu0 0.0
    %1030 = vmatpush1.msra.mxu0 %v678
    %1031 = vmatprep.subr.mxu0 0.0
    %1032 = vmatpush1.msra.mxu0 %v679
    %1033 = vmatprep.subr.mxu0 0.0
    %1034 = vmatpush1.msra.mxu0 %v680
    %1035 = vmatprep.subr.mxu0 0.0
    %1036 = vmatpush1.msra.mxu0 0.0
    %1037 = vmatprep.subr.mxu0 0.0
    %1038 = vmatpush1.msra.mxu0 0.0
    %1039 = vmatprep.subr.mxu0 0.0
    %1040 = vmatpush1.msra.mxu0 0.0
    %1041 = vmatprep.subr.mxu0 0.0
    %1042 = vmatpush1.msra.mxu0 0.0
    %1043 = vmatprep.subr.mxu0 0.0
    %1044 = vmatpush1.msra.mxu0 0.0
    %1045 = vmatprep.subr.mxu0 0.0
    %1046 = vmatpush1.msra.mxu0 0.0
    %1047 = vmatprep.subr.mxu0 0.0
    %1048 = vmatpush1.msra.mxu0 0.0
    %1049 = vmatprep.subr.mxu0 0.0
    %1050 = vmatpush1.msra.mxu0 0.0
    %1051 = vmatprep.subr.mxu0 0.0
    %1052 = vmatpush1.msra.mxu0 0.0
    %1053 = vmatprep.subr.mxu0 0.0
    %1054 = vmatpush1.msra.mxu0 0.0
    %1055 = vmatprep.subr.mxu0 0.0
    %1056 = vmatpush1.msra.mxu0 0.0
    %1057 = vmatprep.subr.mxu0 0.0
    %1058 = vmatpush1.msra.mxu0 0.0
    %1059 = vmatprep.subr.mxu0 0.0
    %1060 = vmatpush1.msra.mxu0 0.0
    %1061 = vmatprep.subr.mxu0 0.0
    %1062 = vmatpush1.msra.mxu0 0.0
    %1063 = vmatprep.subr.mxu0 0.0
    %1064 = vmatpush1.msra.mxu0 0.0
    %1065 = vmatprep.subr.mxu0 0.0
    %1066 = vmatpush1.msra.mxu0 0.0
    %1067 = vmatprep.mubr.f32.mxu0 0.0
    %1068 = vmatmul.mubr.f32.gmra.mrb[0].mxu0 %v1002
    %v1069 = vpop.f32.mrb[0].mxu0
    %v1070 = vadd.f32 0.0, %v1069
    %v1071 = vpop.f32.mrb[0].mxu0
    %1072 = vdwg.mxu0
    %v1073 = vcvt.f32.s32.to.zero.pseudo %v1070
    %vm1074 = vcmp.eq.s32.totalorder %v376, 4
    %1075 = vset.pattern.permute.xlu0 0
    %1076 = vperm.xlu0 %1075, %v1073
    %v1077 = vpop.permute.xlu0 %1076
    %v1078 = vsel %vm1074, %v1077, %v999
    %vm1079 = vcmp.eq.s32.totalorder %v376, %v1077
    %v1080 = vsel %vm1079, 1, 0
    %v1081 = vcvt.s32.f32 %v1080
    %1082 = vmatprep.subr.mxu0 0.0
    %1083 = vmatpush1.msra.mxu0 %v665
    %1084 = vmatprep.subr.mxu0 0.0
    %1085 = vmatpush1.msra.mxu0 %v666
    %1086 = vmatprep.subr.mxu0 0.0
    %1087 = vmatpush1.msra.mxu0 %v667
    %1088 = vmatprep.subr.mxu0 0.0
    %1089 = vmatpush1.msra.mxu0 %v668
    %1090 = vmatprep.subr.mxu0 0.0
    %1091 = vmatpush1.msra.mxu0 %v669
    %1092 = vmatprep.subr.mxu0 0.0
    %1093 = vmatpush1.msra.mxu0 %v670
    %1094 = vmatprep.subr.mxu0 0.0
    %1095 = vmatpush1.msra.mxu0 %v671
    %1096 = vmatprep.subr.mxu0 0.0
    %1097 = vmatpush1.msra.mxu0 %v672
    %1098 = vmatprep.subr.mxu0 0.0
    %1099 = vmatpush1.msra.mxu0 %v673
    %1100 = vmatprep.subr.mxu0 0.0
    %1101 = vmatpush1.msra.mxu0 %v674
    %1102 = vmatprep.subr.mxu0 0.0
    %1103 = vmatpush1.msra.mxu0 %v675
    %1104 = vmatprep.subr.mxu0 0.0
    %1105 = vmatpush1.msra.mxu0 %v676
    %1106 = vmatprep.subr.mxu0 0.0
    %1107 = vmatpush1.msra.mxu0 %v677
    %1108 = vmatprep.subr.mxu0 0.0
    %1109 = vmatpush1.msra.mxu0 %v678
    %1110 = vmatprep.subr.mxu0 0.0
    %1111 = vmatpush1.msra.mxu0 %v679
    %1112 = vmatprep.subr.mxu0 0.0
    %1113 = vmatpush1.msra.mxu0 %v680
    %1114 = vmatprep.subr.mxu0 0.0
    %1115 = vmatpush1.msra.mxu0 0.0
    %1116 = vmatprep.subr.mxu0 0.0
    %1117 = vmatpush1.msra.mxu0 0.0
    %1118 = vmatprep.subr.mxu0 0.0
    %1119 = vmatpush1.msra.mxu0 0.0
    %1120 = vmatprep.subr.mxu0 0.0
    %1121 = vmatpush1.msra.mxu0 0.0
    %1122 = vmatprep.subr.mxu0 0.0
    %1123 = vmatpush1.msra.mxu0 0.0
    %1124 = vmatprep.subr.mxu0 0.0
    %1125 = vmatpush1.msra.mxu0 0.0
    %1126 = vmatprep.subr.mxu0 0.0
    %1127 = vmatpush1.msra.mxu0 0.0
    %1128 = vmatprep.subr.mxu0 0.0
    %1129 = vmatpush1.msra.mxu0 0.0
    %1130 = vmatprep.subr.mxu0 0.0
    %1131 = vmatpush1.msra.mxu0 0.0
    %1132 = vmatprep.subr.mxu0 0.0
    %1133 = vmatpush1.msra.mxu0 0.0
    %1134 = vmatprep.subr.mxu0 0.0
    %1135 = vmatpush1.msra.mxu0 0.0
    %1136 = vmatprep.subr.mxu0 0.0
    %1137 = vmatpush1.msra.mxu0 0.0
    %1138 = vmatprep.subr.mxu0 0.0
    %1139 = vmatpush1.msra.mxu0 0.0
    %1140 = vmatprep.subr.mxu0 0.0
    %1141 = vmatpush1.msra.mxu0 0.0
    %1142 = vmatprep.subr.mxu0 0.0
    %1143 = vmatpush1.msra.mxu0 0.0
    %1144 = vmatprep.subr.mxu0 0.0
    %1145 = vmatpush1.msra.mxu0 0.0
    %1146 = vmatprep.mubr.f32.mxu0 0.0
    %1147 = vmatmul.mubr.f32.gmra.mrb[0].mxu0 %v1081
    %v1148 = vpop.f32.mrb[0].mxu0
    %v1149 = vadd.f32 0.0, %v1148
    %v1150 = vpop.f32.mrb[0].mxu0
    %1151 = vdwg.mxu0
    %v1152 = vcvt.f32.s32.to.zero.pseudo %v1149
    %vm1153 = vcmp.eq.s32.totalorder %v376, 5
    %1154 = vset.pattern.permute.xlu0 0
    %1155 = vperm.xlu0 %1154, %v1152
    %v1156 = vpop.permute.xlu0 %1155
    %v1157 = vsel %vm1153, %v1156, %v1078
    %vm1158 = vcmp.eq.s32.totalorder %v376, %v1156
    %v1159 = vsel %vm1158, 1, 0
    %v1160 = vcvt.s32.f32 %v1159
    %1161 = vmatprep.subr.mxu0 0.0
    %1162 = vmatpush1.msra.mxu0 %v665
    %1163 = vmatprep.subr.mxu0 0.0
    %1164 = vmatpush1.msra.mxu0 %v666
    %1165 = vmatprep.subr.mxu0 0.0
    %1166 = vmatpush1.msra.mxu0 %v667
    %1167 = vmatprep.subr.mxu0 0.0
    %1168 = vmatpush1.msra.mxu0 %v668
    %1169 = vmatprep.subr.mxu0 0.0
    %1170 = vmatpush1.msra.mxu0 %v669
    %1171 = vmatprep.subr.mxu0 0.0
    %1172 = vmatpush1.msra.mxu0 %v670
    %1173 = vmatprep.subr.mxu0 0.0
    %1174 = vmatpush1.msra.mxu0 %v671
    %1175 = vmatprep.subr.mxu0 0.0
    %1176 = vmatpush1.msra.mxu0 %v672
    %1177 = vmatprep.subr.mxu0 0.0
    %1178 = vmatpush1.msra.mxu0 %v673
    %1179 = vmatprep.subr.mxu0 0.0
    %1180 = vmatpush1.msra.mxu0 %v674
    %1181 = vmatprep.subr.mxu0 0.0
    %1182 = vmatpush1.msra.mxu0 %v675
    %1183 = vmatprep.subr.mxu0 0.0
    %1184 = vmatpush1.msra.mxu0 %v676
    %1185 = vmatprep.subr.mxu0 0.0
    %1186 = vmatpush1.msra.mxu0 %v677
    %1187 = vmatprep.subr.mxu0 0.0
    %1188 = vmatpush1.msra.mxu0 %v678
    %1189 = vmatprep.subr.mxu0 0.0
    %1190 = vmatpush1.msra.mxu0 %v679
    %1191 = vmatprep.subr.mxu0 0.0
    %1192 = vmatpush1.msra.mxu0 %v680
    %1193 = vmatprep.subr.mxu0 0.0
    %1194 = vmatpush1.msra.mxu0 0.0
    %1195 = vmatprep.subr.mxu0 0.0
    %1196 = vmatpush1.msra.mxu0 0.0
    %1197 = vmatprep.subr.mxu0 0.0
    %1198 = vmatpush1.msra.mxu0 0.0
    %1199 = vmatprep.subr.mxu0 0.0
    %1200 = vmatpush1.msra.mxu0 0.0
    %1201 = vmatprep.subr.mxu0 0.0
    %1202 = vmatpush1.msra.mxu0 0.0
    %1203 = vmatprep.subr.mxu0 0.0
    %1204 = vmatpush1.msra.mxu0 0.0
    %1205 = vmatprep.subr.mxu0 0.0
    %1206 = vmatpush1.msra.mxu0 0.0
    %1207 = vmatprep.subr.mxu0 0.0
    %1208 = vmatpush1.msra.mxu0 0.0
    %1209 = vmatprep.subr.mxu0 0.0
    %1210 = vmatpush1.msra.mxu0 0.0
    %1211 = vmatprep.subr.mxu0 0.0
    %1212 = vmatpush1.msra.mxu0 0.0
    %1213 = vmatprep.subr.mxu0 0.0
    %1214 = vmatpush1.msra.mxu0 0.0
    %1215 = vmatprep.subr.mxu0 0.0
    %1216 = vmatpush1.msra.mxu0 0.0
    %1217 = vmatprep.subr.mxu0 0.0
    %1218 = vmatpush1.msra.mxu0 0.0
    %1219 = vmatprep.subr.mxu0 0.0
    %1220 = vmatpush1.msra.mxu0 0.0
    %1221 = vmatprep.subr.mxu0 0.0
    %1222 = vmatpush1.msra.mxu0 0.0
    %1223 = vmatprep.subr.mxu0 0.0
    %1224 = vmatpush1.msra.mxu0 0.0
    %1225 = vmatprep.mubr.f32.mxu0 0.0
    %1226 = vmatmul.mubr.f32.gmra.mrb[0].mxu0 %v1160
    %v1227 = vpop.f32.mrb[0].mxu0
    %v1228 = vadd.f32 0.0, %v1227
    %v1229 = vpop.f32.mrb[0].mxu0
    %1230 = vdwg.mxu0
    %v1231 = vcvt.f32.s32.to.zero.pseudo %v1228
    %vm1232 = vcmp.eq.s32.totalorder %v376, 6
    %1233 = vset.pattern.permute.xlu0 0
    %1234 = vperm.xlu0 %1233, %v1231
    %v1235 = vpop.permute.xlu0 %1234
    %v1236 = vsel %vm1232, %v1235, %v1157
    %vm1237 = vcmp.eq.s32.totalorder %v376, %v1235
    %v1238 = vsel %vm1237, 1, 0
    %v1239 = vcvt.s32.f32 %v1238
    %1240 = vmatprep.subr.mxu0 0.0
    %1241 = vmatpush1.msra.mxu0 %v665
    %1242 = vmatprep.subr.mxu0 0.0
    %1243 = vmatpush1.msra.mxu0 %v666
    %1244 = vmatprep.subr.mxu0 0.0
    %1245 = vmatpush1.msra.mxu0 %v667
    %1246 = vmatprep.subr.mxu0 0.0
    %1247 = vmatpush1.msra.mxu0 %v668
    %1248 = vmatprep.subr.mxu0 0.0
    %1249 = vmatpush1.msra.mxu0 %v669
    %1250 = vmatprep.subr.mxu0 0.0
    %1251 = vmatpush1.msra.mxu0 %v670
    %1252 = vmatprep.subr.mxu0 0.0
    %1253 = vmatpush1.msra.mxu0 %v671
    %1254 = vmatprep.subr.mxu0 0.0
    %1255 = vmatpush1.msra.mxu0 %v672
    %1256 = vmatprep.subr.mxu0 0.0
    %1257 = vmatpush1.msra.mxu0 %v673
    %1258 = vmatprep.subr.mxu0 0.0
    %1259 = vmatpush1.msra.mxu0 %v674
    %1260 = vmatprep.subr.mxu0 0.0
    %1261 = vmatpush1.msra.mxu0 %v675
    %1262 = vmatprep.subr.mxu0 0.0
    %1263 = vmatpush1.msra.mxu0 %v676
    %1264 = vmatprep.subr.mxu0 0.0
    %1265 = vmatpush1.msra.mxu0 %v677
    %1266 = vmatprep.subr.mxu0 0.0
    %1267 = vmatpush1.msra.mxu0 %v678
    %1268 = vmatprep.subr.mxu0 0.0
    %1269 = vmatpush1.msra.mxu0 %v679
    %1270 = vmatprep.subr.mxu0 0.0
    %1271 = vmatpush1.msra.mxu0 %v680
    %1272 = vmatprep.subr.mxu0 0.0
    %1273 = vmatpush1.msra.mxu0 0.0
    %1274 = vmatprep.subr.mxu0 0.0
    %1275 = vmatpush1.msra.mxu0 0.0
    %1276 = vmatprep.subr.mxu0 0.0
    %1277 = vmatpush1.msra.mxu0 0.0
    %1278 = vmatprep.subr.mxu0 0.0
    %1279 = vmatpush1.msra.mxu0 0.0
    %1280 = vmatprep.subr.mxu0 0.0
    %1281 = vmatpush1.msra.mxu0 0.0
    %1282 = vmatprep.subr.mxu0 0.0
    %1283 = vmatpush1.msra.mxu0 0.0
    %1284 = vmatprep.subr.mxu0 0.0
    %1285 = vmatpush1.msra.mxu0 0.0
    %1286 = vmatprep.subr.mxu0 0.0
    %1287 = vmatpush1.msra.mxu0 0.0
    %1288 = vmatprep.subr.mxu0 0.0
    %1289 = vmatpush1.msra.mxu0 0.0
    %1290 = vmatprep.subr.mxu0 0.0
    %1291 = vmatpush1.msra.mxu0 0.0
    %1292 = vmatprep.subr.mxu0 0.0
    %1293 = vmatpush1.msra.mxu0 0.0
    %1294 = vmatprep.subr.mxu0 0.0
    %1295 = vmatpush1.msra.mxu0 0.0
    %1296 = vmatprep.subr.mxu0 0.0
    %1297 = vmatpush1.msra.mxu0 0.0
    %1298 = vmatprep.subr.mxu0 0.0
    %1299 = vmatpush1.msra.mxu0 0.0
    %1300 = vmatprep.subr.mxu0 0.0
    %1301 = vmatpush1.msra.mxu0 0.0
    %1302 = vmatprep.subr.mxu0 0.0
    %1303 = vmatpush1.msra.mxu0 0.0
    %1304 = vmatprep.mubr.f32.mxu0 0.0
    %1305 = vmatmul.mubr.f32.gmra.mrb[0].mxu0 %v1239
    %v1306 = vpop.f32.mrb[0].mxu0
    %v1307 = vadd.f32 0.0, %v1306
    %v1308 = vpop.f32.mrb[0].mxu0
    %1309 = vdwg.mxu0
    %v1310 = vcvt.f32.s32.to.zero.pseudo %v1307
    %vm1311 = vcmp.eq.s32.totalorder %v376, 7
    %1312 = vset.pattern.permute.xlu0 0
    %1313 = vperm.xlu0 %1312, %v1310
    %v1314 = vpop.permute.xlu0 %1313
    %v1315 = vsel %vm1311, %v1314, %v1236
    %vm1316 = vcmask 31744
    %1317 = vst.msk [vmem:[#allocation2] sm:$0xff] %vm1316, %v19
    %1318 = vrot.lane.b32.xlu0 %v1315, 4
    %v1319 = vpop.permute.xlu0 %1318
    %vm1320 = vcmask 97312
    %1321 = vst.msk [vmem:[#allocation2] sm:$0xff] %vm1320, %v1319
    // Predicated region
    $region18: #{tpu_custom_call.1} parent=1 // pred_check
      _
    $region19: #{tpu_custom_call.1} parent=1 // pred_check_branch
      %1323 = sbr.rel (0) target = $region21
    $region20: #{tpu_custom_call.1} parent=1 // pred_region
      %s1325 = ssub.s32 128, 128
      %1326 = vsyncadd [#allocation3], %s1325
      %s1328 = sshll.u32 [#allocation2], 4
      %s1329 = int_to_ptr.vmem [resolvable:$true] %s1328
      %1331 = dma.vmem_to_hbm [thread:$0]  %s1329, 128, %s4, [#allocation3]
    $region21: #{tpu_custom_call.1} parent=1 // pred_fallthru
      _
    // Predicated region
    $region22: #{tpu_custom_call.1} parent=1 // pred_check
      _
    $region23: #{tpu_custom_call.1} parent=1 // pred_check_branch
      %1333 = sbr.rel (0) target = $region25
    $region24: #{tpu_custom_call.1} parent=1 // pred_region
      %1334 = dma.done [#allocation3], 128
    $region25: #{tpu_custom_call.1} parent=1 // pred_fallthru
      _
    %1335 = vsyncpa [#allocation3], 1

</llo_original>
